<compile_context>
chip_gen: v6e
topology: v6e:2x2x1
jax: 0.10.0
libtpu: 0.0.40
codegen_flags: <defaults>
</compile_context>

<pallas_src>
import jax
import jax.numpy as jnp
from jax.experimental import pallas as pl
from jax.experimental.pallas import tpu as pltpu


def _round_up(x: int, m: int) -> int:
    return (x + m - 1) // m * m


GROUP = 8          # batch rows per inner step (one sublane tile)
OUT_PAD = 128      # lane-dense output slab width


def _make_kernel(T: int, block_b: int):
    """Builds the kernel with static sequence length T and batch block size."""

    def kernel(tok_ref,    # (B_pad*T,) int32, SMEM (scalar prefetch), flattened
               emb_ref,    # (V, D) f32 VMEM, resident: emb @ W1^T/T + b1/T
               w2_ref,     # (D, OUT_PAD) f32, resident (lane-padded fc2 weight)
               b2_ref,     # (1, OUT_PAD) f32, resident
               out_ref):   # (block_b, OUT_PAD) f32 output block
        blk = pl.program_id(0)

        def group_body(gi, carry):
            # --- embedding gather + sum-pool (fc1 already folded into table) ---
            # GROUP independent add-chains -> ILP hides the dynamic-load latency.
            rows = []
            for r in range(GROUP):
                base = (blk * block_b + gi * GROUP + r) * T
                acc = emb_ref[pl.ds(tok_ref[base], 1), :]          # (1, D)
                for t in range(1, T):
                    acc = acc + emb_ref[pl.ds(tok_ref[base + t], 1), :]
                rows.append(acc)
            pre = jnp.concatenate(rows, axis=0)                     # (GROUP, D)

            # --- ReLU (fc1 weight/bias and 1/T are inside the table rows) ---
            h = jnp.maximum(pre, 0.0)

            # --- fc2 on the (otherwise idle) MXU; lane-dense output ---
            o = jnp.dot(h, w2_ref[...], preferred_element_type=jnp.float32)
            o = o + b2_ref[...]

            row0 = pl.multiple_of(gi * GROUP, GROUP)
            out_ref[pl.ds(row0, GROUP), :] = o                      # full (8,128) store
            return carry

        jax.lax.fori_loop(0, block_b // GROUP, group_body, 0)

    return kernel


def samplenet_forward(tokens, emb_table, w1, b1, w2, b2, *, block_b=256):
    """tokens: (B, T) integer ids; weights in PyTorch convention (out, in)."""
    tokens = jnp.asarray(tokens)
    B, T = tokens.shape
    V, D = emb_table.shape
    OUT = w2.shape[0]

    # Batch tiling: multiple of the 8-row group; keep >=2 grid steps when B
    # allows so the "parallel" batch axis can shard over both v7x TensorCores.
    bb = min(block_b, _round_up(pl.cdiv(B, 2), GROUP))
    bb = max(bb, GROUP)
    B_pad = _round_up(B, bb)

    # Clamp ids (matches jnp.take's clamping; avoids OOB VMEM reads — note
    # PyTorch nn.Embedding would instead raise on out-of-range ids).  Pad the
    # batch with token-0 rows (padded outputs are sliced away) and flatten to
    # 1D so the SMEM prefetch is not padded from T columns to 128.
    tok = jnp.clip(tokens.astype(jnp.int32), 0, V - 1)
    if B_pad != B:
        tok = jnp.pad(tok, ((0, B_pad - B), (0, 0)))
    tok = tok.reshape(-1)                                           # (B_pad*T,)

    # Fold mean-pool (1/T), fc1 weight and fc1 bias into the embedding table
    # (exact algebraic identity, see header).
    emb = jnp.asarray(emb_table, jnp.float32)
    w1f = jnp.asarray(w1, jnp.float32)
    b1f = jnp.asarray(b1, jnp.float32)
    emb_fold = emb @ (w1f.T / T) + b1f / T                          # (V, D)

    # fc2, lane-padded to 128 outputs so the kernel's output store is dense.
    w2_t = jnp.asarray(w2, jnp.float32).T                           # (D, OUT)
    b2_r = jnp.asarray(b2, jnp.float32).reshape(1, -1)              # (1, OUT)
    w2_p = jnp.zeros((D, OUT_PAD), jnp.float32).at[:, :OUT].set(w2_t)
    b2_p = jnp.zeros((1, OUT_PAD), jnp.float32).at[:, :OUT].set(b2_r)

    kernel = _make_kernel(T, bb)
    grid = (B_pad // bb,)
    out_padded = pl.pallas_call(
        kernel,
        out_shape=jax.ShapeDtypeStruct((B_pad, OUT_PAD), jnp.float32),
        grid_spec=pltpu.PrefetchScalarGridSpec(
            num_scalar_prefetch=1,                   # flattened tokens -> SMEM
            grid=grid,
            in_specs=[
                # Resident parameter blocks (constant block index).
                pl.BlockSpec((V, D), lambda i, tok: (0, 0)),          # folded table
                pl.BlockSpec((D, OUT_PAD), lambda i, tok: (0, 0)),    # fc2 weight
                pl.BlockSpec((1, OUT_PAD), lambda i, tok: (0, 0)),    # fc2 bias
            ],
            out_specs=pl.BlockSpec((bb, OUT_PAD), lambda i, tok: (i, 0)),
        ),
        compiler_params=pltpu.CompilerParams(
            dimension_semantics=("parallel",),       # batch blocks independent
            vmem_limit_bytes=64 * 1024 * 1024,       # headroom for larger vocabs (v5e default is 16 MiB)
        ),
    )(tok, emb_fold, w2_p, b2_p)

    return out_padded[:B, :OUT]


def samplenet_reference(tokens, emb_table, w1, b1, w2, b2):
    """Pure-JAX reference matching the PyTorch forward."""
    x = jnp.take(emb_table, tokens, axis=0)          # (B, T, 16)
    x = jnp.mean(x, axis=1)                          # pool over T -> (B, 16)
    x = x @ w1.T + b1
    x = jnp.maximum(x, 0.0)
    return x @ w2.T + b2


if __name__ == "__main__":
    # Small, forward-consistent shapes.
    VOCAB = 32
    B, T, D, OUT = 2, 8, 16, 2

    key = jax.random.PRNGKey(0)
    k_tok, k_emb, k_w1, k_b1, k_w2, k_b2 = jax.random.split(key, 6)

    tokens = jax.random.randint(k_tok, (B, T), 0, VOCAB, dtype=jnp.int32)
    emb_table = jax.random.normal(k_emb, (VOCAB, D), dtype=jnp.float32) * 0.1
    w1 = jax.random.normal(k_w1, (D, D), dtype=jnp.float32) * 0.1
    b1 = jax.random.normal(k_b1, (D,), dtype=jnp.float32) * 0.1
    w2 = jax.random.normal(k_w2, (OUT, D), dtype=jnp.float32) * 0.1
    b2 = jax.random.normal(k_b2, (OUT,), dtype=jnp.float32) * 0.1

    out = samplenet_forward(tokens, emb_table, w1, b1, w2, b2)
    out = jax.block_until_ready(out)

    ref = samplenet_reference(tokens, emb_table, w1, b1, w2, b2)
    assert out.shape == (B, OUT), out.shape
    assert jnp.allclose(out, ref, atol=1e-5, rtol=1e-5), (out, ref)

    print("KERNEL_OK")
</pallas_src>

<mosaic_0001>
module attributes {stable_mosaic.version = 11 : i64} {
  func.func @kernel(%arg0: i32, %arg1: memref<64xi32, #tpu.memory_space<smem>>, %arg2: memref<32x16xf32, #tpu.memory_space<vmem>>, %arg3: memref<16x128xf32, #tpu.memory_space<vmem>>, %arg4: memref<1x128xf32, #tpu.memory_space<vmem>>, %arg5: memref<8x128xf32, #tpu.memory_space<vmem>>) attributes {dimension_semantics = [#tpu.dimension_semantics<parallel>], iteration_bounds = array<i64: 1>, scalar_prefetch = 1 : i64, scratch_operands = 0 : i64, tpu.core_type = #tpu.core_type<tc>, window_params = [{pipeline_mode = #tpu.pipeline_mode<synchronous>, transform_indices = @transform_0, window_bounds = array<i64: 32, 16>}, {pipeline_mode = #tpu.pipeline_mode<synchronous>, transform_indices = @transform_1, window_bounds = array<i64: 16, 128>}, {pipeline_mode = #tpu.pipeline_mode<synchronous>, transform_indices = @transform_2, window_bounds = array<i64: 1, 128>}, {transform_indices = @transform_3, window_bounds = array<i64: 8, 128>}]} {
    %c0_i32 = arith.constant 0 : i32
    %c8_i32 = arith.constant 8 : i32
    %0 = arith.muli %arg0, %c8_i32 : i32
    %c8_i32_0 = arith.constant 8 : i32
    %1 = arith.muli %c0_i32, %c8_i32_0 : i32
    %2 = arith.addi %0, %1 : i32
    %c0_i32_1 = arith.constant 0 : i32
    %3 = arith.addi %2, %c0_i32_1 : i32
    %c8_i32_2 = arith.constant 8 : i32
    %4 = arith.muli %3, %c8_i32_2 : i32
    %5 = arith.index_cast %4 : i32 to index
    %6 = memref.load %arg1[%5] : memref<64xi32, #tpu.memory_space<smem>>
    %7 = arith.index_cast %6 : i32 to index
    %c0 = arith.constant 0 : index
    %8 = vector.load %arg2[%7, %c0] : memref<32x16xf32, #tpu.memory_space<vmem>>, vector<1x16xf32>
    %c1_i32 = arith.constant 1 : i32
    %9 = arith.addi %4, %c1_i32 : i32
    %10 = arith.index_cast %9 : i32 to index
    %11 = memref.load %arg1[%10] : memref<64xi32, #tpu.memory_space<smem>>
    %12 = arith.index_cast %11 : i32 to index
    %c0_3 = arith.constant 0 : index
    %13 = vector.load %arg2[%12, %c0_3] : memref<32x16xf32, #tpu.memory_space<vmem>>, vector<1x16xf32>
    %14 = arith.addf %8, %13 : vector<1x16xf32>
    %c2_i32 = arith.constant 2 : i32
    %15 = arith.addi %4, %c2_i32 : i32
    %16 = arith.index_cast %15 : i32 to index
    %17 = memref.load %arg1[%16] : memref<64xi32, #tpu.memory_space<smem>>
    %18 = arith.index_cast %17 : i32 to index
    %c0_4 = arith.constant 0 : index
    %19 = vector.load %arg2[%18, %c0_4] : memref<32x16xf32, #tpu.memory_space<vmem>>, vector<1x16xf32>
    %20 = arith.addf %14, %19 : vector<1x16xf32>
    %c3_i32 = arith.constant 3 : i32
    %21 = arith.addi %4, %c3_i32 : i32
    %22 = arith.index_cast %21 : i32 to index
    %23 = memref.load %arg1[%22] : memref<64xi32, #tpu.memory_space<smem>>
    %24 = arith.index_cast %23 : i32 to index
    %c0_5 = arith.constant 0 : index
    %25 = vector.load %arg2[%24, %c0_5] : memref<32x16xf32, #tpu.memory_space<vmem>>, vector<1x16xf32>
    %26 = arith.addf %20, %25 : vector<1x16xf32>
    %c4_i32 = arith.constant 4 : i32
    %27 = arith.addi %4, %c4_i32 : i32
    %28 = arith.index_cast %27 : i32 to index
    %29 = memref.load %arg1[%28] : memref<64xi32, #tpu.memory_space<smem>>
    %30 = arith.index_cast %29 : i32 to index
    %c0_6 = arith.constant 0 : index
    %31 = vector.load %arg2[%30, %c0_6] : memref<32x16xf32, #tpu.memory_space<vmem>>, vector<1x16xf32>
    %32 = arith.addf %26, %31 : vector<1x16xf32>
    %c5_i32 = arith.constant 5 : i32
    %33 = arith.addi %4, %c5_i32 : i32
    %34 = arith.index_cast %33 : i32 to index
    %35 = memref.load %arg1[%34] : memref<64xi32, #tpu.memory_space<smem>>
    %36 = arith.index_cast %35 : i32 to index
    %c0_7 = arith.constant 0 : index
    %37 = vector.load %arg2[%36, %c0_7] : memref<32x16xf32, #tpu.memory_space<vmem>>, vector<1x16xf32>
    %38 = arith.addf %32, %37 : vector<1x16xf32>
    %c6_i32 = arith.constant 6 : i32
    %39 = arith.addi %4, %c6_i32 : i32
    %40 = arith.index_cast %39 : i32 to index
    %41 = memref.load %arg1[%40] : memref<64xi32, #tpu.memory_space<smem>>
    %42 = arith.index_cast %41 : i32 to index
    %c0_8 = arith.constant 0 : index
    %43 = vector.load %arg2[%42, %c0_8] : memref<32x16xf32, #tpu.memory_space<vmem>>, vector<1x16xf32>
    %44 = arith.addf %38, %43 : vector<1x16xf32>
    %c7_i32 = arith.constant 7 : i32
    %45 = arith.addi %4, %c7_i32 : i32
    %46 = arith.index_cast %45 : i32 to index
    %47 = memref.load %arg1[%46] : memref<64xi32, #tpu.memory_space<smem>>
    %48 = arith.index_cast %47 : i32 to index
    %c0_9 = arith.constant 0 : index
    %49 = vector.load %arg2[%48, %c0_9] : memref<32x16xf32, #tpu.memory_space<vmem>>, vector<1x16xf32>
    %50 = arith.addf %44, %49 : vector<1x16xf32>
    %c8_i32_10 = arith.constant 8 : i32
    %51 = arith.muli %arg0, %c8_i32_10 : i32
    %c8_i32_11 = arith.constant 8 : i32
    %52 = arith.muli %c0_i32, %c8_i32_11 : i32
    %53 = arith.addi %51, %52 : i32
    %c1_i32_12 = arith.constant 1 : i32
    %54 = arith.addi %53, %c1_i32_12 : i32
    %c8_i32_13 = arith.constant 8 : i32
    %55 = arith.muli %54, %c8_i32_13 : i32
    %56 = arith.index_cast %55 : i32 to index
    %57 = memref.load %arg1[%56] : memref<64xi32, #tpu.memory_space<smem>>
    %58 = arith.index_cast %57 : i32 to index
    %c0_14 = arith.constant 0 : index
    %59 = vector.load %arg2[%58, %c0_14] : memref<32x16xf32, #tpu.memory_space<vmem>>, vector<1x16xf32>
    %c1_i32_15 = arith.constant 1 : i32
    %60 = arith.addi %55, %c1_i32_15 : i32
    %61 = arith.index_cast %60 : i32 to index
    %62 = memref.load %arg1[%61] : memref<64xi32, #tpu.memory_space<smem>>
    %63 = arith.index_cast %62 : i32 to index
    %c0_16 = arith.constant 0 : index
    %64 = vector.load %arg2[%63, %c0_16] : memref<32x16xf32, #tpu.memory_space<vmem>>, vector<1x16xf32>
    %65 = arith.addf %59, %64 : vector<1x16xf32>
    %c2_i32_17 = arith.constant 2 : i32
    %66 = arith.addi %55, %c2_i32_17 : i32
    %67 = arith.index_cast %66 : i32 to index
    %68 = memref.load %arg1[%67] : memref<64xi32, #tpu.memory_space<smem>>
    %69 = arith.index_cast %68 : i32 to index
    %c0_18 = arith.constant 0 : index
    %70 = vector.load %arg2[%69, %c0_18] : memref<32x16xf32, #tpu.memory_space<vmem>>, vector<1x16xf32>
    %71 = arith.addf %65, %70 : vector<1x16xf32>
    %c3_i32_19 = arith.constant 3 : i32
    %72 = arith.addi %55, %c3_i32_19 : i32
    %73 = arith.index_cast %72 : i32 to index
    %74 = memref.load %arg1[%73] : memref<64xi32, #tpu.memory_space<smem>>
    %75 = arith.index_cast %74 : i32 to index
    %c0_20 = arith.constant 0 : index
    %76 = vector.load %arg2[%75, %c0_20] : memref<32x16xf32, #tpu.memory_space<vmem>>, vector<1x16xf32>
    %77 = arith.addf %71, %76 : vector<1x16xf32>
    %c4_i32_21 = arith.constant 4 : i32
    %78 = arith.addi %55, %c4_i32_21 : i32
    %79 = arith.index_cast %78 : i32 to index
    %80 = memref.load %arg1[%79] : memref<64xi32, #tpu.memory_space<smem>>
    %81 = arith.index_cast %80 : i32 to index
    %c0_22 = arith.constant 0 : index
    %82 = vector.load %arg2[%81, %c0_22] : memref<32x16xf32, #tpu.memory_space<vmem>>, vector<1x16xf32>
    %83 = arith.addf %77, %82 : vector<1x16xf32>
    %c5_i32_23 = arith.constant 5 : i32
    %84 = arith.addi %55, %c5_i32_23 : i32
    %85 = arith.index_cast %84 : i32 to index
    %86 = memref.load %arg1[%85] : memref<64xi32, #tpu.memory_space<smem>>
    %87 = arith.index_cast %86 : i32 to index
    %c0_24 = arith.constant 0 : index
    %88 = vector.load %arg2[%87, %c0_24] : memref<32x16xf32, #tpu.memory_space<vmem>>, vector<1x16xf32>
    %89 = arith.addf %83, %88 : vector<1x16xf32>
    %c6_i32_25 = arith.constant 6 : i32
    %90 = arith.addi %55, %c6_i32_25 : i32
    %91 = arith.index_cast %90 : i32 to index
    %92 = memref.load %arg1[%91] : memref<64xi32, #tpu.memory_space<smem>>
    %93 = arith.index_cast %92 : i32 to index
    %c0_26 = arith.constant 0 : index
    %94 = vector.load %arg2[%93, %c0_26] : memref<32x16xf32, #tpu.memory_space<vmem>>, vector<1x16xf32>
    %95 = arith.addf %89, %94 : vector<1x16xf32>
    %c7_i32_27 = arith.constant 7 : i32
    %96 = arith.addi %55, %c7_i32_27 : i32
    %97 = arith.index_cast %96 : i32 to index
    %98 = memref.load %arg1[%97] : memref<64xi32, #tpu.memory_space<smem>>
    %99 = arith.index_cast %98 : i32 to index
    %c0_28 = arith.constant 0 : index
    %100 = vector.load %arg2[%99, %c0_28] : memref<32x16xf32, #tpu.memory_space<vmem>>, vector<1x16xf32>
    %101 = arith.addf %95, %100 : vector<1x16xf32>
    %c8_i32_29 = arith.constant 8 : i32
    %102 = arith.muli %arg0, %c8_i32_29 : i32
    %c8_i32_30 = arith.constant 8 : i32
    %103 = arith.muli %c0_i32, %c8_i32_30 : i32
    %104 = arith.addi %102, %103 : i32
    %c2_i32_31 = arith.constant 2 : i32
    %105 = arith.addi %104, %c2_i32_31 : i32
    %c8_i32_32 = arith.constant 8 : i32
    %106 = arith.muli %105, %c8_i32_32 : i32
    %107 = arith.index_cast %106 : i32 to index
    %108 = memref.load %arg1[%107] : memref<64xi32, #tpu.memory_space<smem>>
    %109 = arith.index_cast %108 : i32 to index
    %c0_33 = arith.constant 0 : index
    %110 = vector.load %arg2[%109, %c0_33] : memref<32x16xf32, #tpu.memory_space<vmem>>, vector<1x16xf32>
    %c1_i32_34 = arith.constant 1 : i32
    %111 = arith.addi %106, %c1_i32_34 : i32
    %112 = arith.index_cast %111 : i32 to index
    %113 = memref.load %arg1[%112] : memref<64xi32, #tpu.memory_space<smem>>
    %114 = arith.index_cast %113 : i32 to index
    %c0_35 = arith.constant 0 : index
    %115 = vector.load %arg2[%114, %c0_35] : memref<32x16xf32, #tpu.memory_space<vmem>>, vector<1x16xf32>
    %116 = arith.addf %110, %115 : vector<1x16xf32>
    %c2_i32_36 = arith.constant 2 : i32
    %117 = arith.addi %106, %c2_i32_36 : i32
    %118 = arith.index_cast %117 : i32 to index
    %119 = memref.load %arg1[%118] : memref<64xi32, #tpu.memory_space<smem>>
    %120 = arith.index_cast %119 : i32 to index
    %c0_37 = arith.constant 0 : index
    %121 = vector.load %arg2[%120, %c0_37] : memref<32x16xf32, #tpu.memory_space<vmem>>, vector<1x16xf32>
    %122 = arith.addf %116, %121 : vector<1x16xf32>
    %c3_i32_38 = arith.constant 3 : i32
    %123 = arith.addi %106, %c3_i32_38 : i32
    %124 = arith.index_cast %123 : i32 to index
    %125 = memref.load %arg1[%124] : memref<64xi32, #tpu.memory_space<smem>>
    %126 = arith.index_cast %125 : i32 to index
    %c0_39 = arith.constant 0 : index
    %127 = vector.load %arg2[%126, %c0_39] : memref<32x16xf32, #tpu.memory_space<vmem>>, vector<1x16xf32>
    %128 = arith.addf %122, %127 : vector<1x16xf32>
    %c4_i32_40 = arith.constant 4 : i32
    %129 = arith.addi %106, %c4_i32_40 : i32
    %130 = arith.index_cast %129 : i32 to index
    %131 = memref.load %arg1[%130] : memref<64xi32, #tpu.memory_space<smem>>
    %132 = arith.index_cast %131 : i32 to index
    %c0_41 = arith.constant 0 : index
    %133 = vector.load %arg2[%132, %c0_41] : memref<32x16xf32, #tpu.memory_space<vmem>>, vector<1x16xf32>
    %134 = arith.addf %128, %133 : vector<1x16xf32>
    %c5_i32_42 = arith.constant 5 : i32
    %135 = arith.addi %106, %c5_i32_42 : i32
    %136 = arith.index_cast %135 : i32 to index
    %137 = memref.load %arg1[%136] : memref<64xi32, #tpu.memory_space<smem>>
    %138 = arith.index_cast %137 : i32 to index
    %c0_43 = arith.constant 0 : index
    %139 = vector.load %arg2[%138, %c0_43] : memref<32x16xf32, #tpu.memory_space<vmem>>, vector<1x16xf32>
    %140 = arith.addf %134, %139 : vector<1x16xf32>
    %c6_i32_44 = arith.constant 6 : i32
    %141 = arith.addi %106, %c6_i32_44 : i32
    %142 = arith.index_cast %141 : i32 to index
    %143 = memref.load %arg1[%142] : memref<64xi32, #tpu.memory_space<smem>>
    %144 = arith.index_cast %143 : i32 to index
    %c0_45 = arith.constant 0 : index
    %145 = vector.load %arg2[%144, %c0_45] : memref<32x16xf32, #tpu.memory_space<vmem>>, vector<1x16xf32>
    %146 = arith.addf %140, %145 : vector<1x16xf32>
    %c7_i32_46 = arith.constant 7 : i32
    %147 = arith.addi %106, %c7_i32_46 : i32
    %148 = arith.index_cast %147 : i32 to index
    %149 = memref.load %arg1[%148] : memref<64xi32, #tpu.memory_space<smem>>
    %150 = arith.index_cast %149 : i32 to index
    %c0_47 = arith.constant 0 : index
    %151 = vector.load %arg2[%150, %c0_47] : memref<32x16xf32, #tpu.memory_space<vmem>>, vector<1x16xf32>
    %152 = arith.addf %146, %151 : vector<1x16xf32>
    %c8_i32_48 = arith.constant 8 : i32
    %153 = arith.muli %arg0, %c8_i32_48 : i32
    %c8_i32_49 = arith.constant 8 : i32
    %154 = arith.muli %c0_i32, %c8_i32_49 : i32
    %155 = arith.addi %153, %154 : i32
    %c3_i32_50 = arith.constant 3 : i32
    %156 = arith.addi %155, %c3_i32_50 : i32
    %c8_i32_51 = arith.constant 8 : i32
    %157 = arith.muli %156, %c8_i32_51 : i32
    %158 = arith.index_cast %157 : i32 to index
    %159 = memref.load %arg1[%158] : memref<64xi32, #tpu.memory_space<smem>>
    %160 = arith.index_cast %159 : i32 to index
    %c0_52 = arith.constant 0 : index
    %161 = vector.load %arg2[%160, %c0_52] : memref<32x16xf32, #tpu.memory_space<vmem>>, vector<1x16xf32>
    %c1_i32_53 = arith.constant 1 : i32
    %162 = arith.addi %157, %c1_i32_53 : i32
    %163 = arith.index_cast %162 : i32 to index
    %164 = memref.load %arg1[%163] : memref<64xi32, #tpu.memory_space<smem>>
    %165 = arith.index_cast %164 : i32 to index
    %c0_54 = arith.constant 0 : index
    %166 = vector.load %arg2[%165, %c0_54] : memref<32x16xf32, #tpu.memory_space<vmem>>, vector<1x16xf32>
    %167 = arith.addf %161, %166 : vector<1x16xf32>
    %c2_i32_55 = arith.constant 2 : i32
    %168 = arith.addi %157, %c2_i32_55 : i32
    %169 = arith.index_cast %168 : i32 to index
    %170 = memref.load %arg1[%169] : memref<64xi32, #tpu.memory_space<smem>>
    %171 = arith.index_cast %170 : i32 to index
    %c0_56 = arith.constant 0 : index
    %172 = vector.load %arg2[%171, %c0_56] : memref<32x16xf32, #tpu.memory_space<vmem>>, vector<1x16xf32>
    %173 = arith.addf %167, %172 : vector<1x16xf32>
    %c3_i32_57 = arith.constant 3 : i32
    %174 = arith.addi %157, %c3_i32_57 : i32
    %175 = arith.index_cast %174 : i32 to index
    %176 = memref.load %arg1[%175] : memref<64xi32, #tpu.memory_space<smem>>
    %177 = arith.index_cast %176 : i32 to index
    %c0_58 = arith.constant 0 : index
    %178 = vector.load %arg2[%177, %c0_58] : memref<32x16xf32, #tpu.memory_space<vmem>>, vector<1x16xf32>
    %179 = arith.addf %173, %178 : vector<1x16xf32>
    %c4_i32_59 = arith.constant 4 : i32
    %180 = arith.addi %157, %c4_i32_59 : i32
    %181 = arith.index_cast %180 : i32 to index
    %182 = memref.load %arg1[%181] : memref<64xi32, #tpu.memory_space<smem>>
    %183 = arith.index_cast %182 : i32 to index
    %c0_60 = arith.constant 0 : index
    %184 = vector.load %arg2[%183, %c0_60] : memref<32x16xf32, #tpu.memory_space<vmem>>, vector<1x16xf32>
    %185 = arith.addf %179, %184 : vector<1x16xf32>
    %c5_i32_61 = arith.constant 5 : i32
    %186 = arith.addi %157, %c5_i32_61 : i32
    %187 = arith.index_cast %186 : i32 to index
    %188 = memref.load %arg1[%187] : memref<64xi32, #tpu.memory_space<smem>>
    %189 = arith.index_cast %188 : i32 to index
    %c0_62 = arith.constant 0 : index
    %190 = vector.load %arg2[%189, %c0_62] : memref<32x16xf32, #tpu.memory_space<vmem>>, vector<1x16xf32>
    %191 = arith.addf %185, %190 : vector<1x16xf32>
    %c6_i32_63 = arith.constant 6 : i32
    %192 = arith.addi %157, %c6_i32_63 : i32
    %193 = arith.index_cast %192 : i32 to index
    %194 = memref.load %arg1[%193] : memref<64xi32, #tpu.memory_space<smem>>
    %195 = arith.index_cast %194 : i32 to index
    %c0_64 = arith.constant 0 : index
    %196 = vector.load %arg2[%195, %c0_64] : memref<32x16xf32, #tpu.memory_space<vmem>>, vector<1x16xf32>
    %197 = arith.addf %191, %196 : vector<1x16xf32>
    %c7_i32_65 = arith.constant 7 : i32
    %198 = arith.addi %157, %c7_i32_65 : i32
    %199 = arith.index_cast %198 : i32 to index
    %200 = memref.load %arg1[%199] : memref<64xi32, #tpu.memory_space<smem>>
    %201 = arith.index_cast %200 : i32 to index
    %c0_66 = arith.constant 0 : index
    %202 = vector.load %arg2[%201, %c0_66] : memref<32x16xf32, #tpu.memory_space<vmem>>, vector<1x16xf32>
    %203 = arith.addf %197, %202 : vector<1x16xf32>
    %c8_i32_67 = arith.constant 8 : i32
    %204 = arith.muli %arg0, %c8_i32_67 : i32
    %c8_i32_68 = arith.constant 8 : i32
    %205 = arith.muli %c0_i32, %c8_i32_68 : i32
    %206 = arith.addi %204, %205 : i32
    %c4_i32_69 = arith.constant 4 : i32
    %207 = arith.addi %206, %c4_i32_69 : i32
    %c8_i32_70 = arith.constant 8 : i32
    %208 = arith.muli %207, %c8_i32_70 : i32
    %209 = arith.index_cast %208 : i32 to index
    %210 = memref.load %arg1[%209] : memref<64xi32, #tpu.memory_space<smem>>
    %211 = arith.index_cast %210 : i32 to index
    %c0_71 = arith.constant 0 : index
    %212 = vector.load %arg2[%211, %c0_71] : memref<32x16xf32, #tpu.memory_space<vmem>>, vector<1x16xf32>
    %c1_i32_72 = arith.constant 1 : i32
    %213 = arith.addi %208, %c1_i32_72 : i32
    %214 = arith.index_cast %213 : i32 to index
    %215 = memref.load %arg1[%214] : memref<64xi32, #tpu.memory_space<smem>>
    %216 = arith.index_cast %215 : i32 to index
    %c0_73 = arith.constant 0 : index
    %217 = vector.load %arg2[%216, %c0_73] : memref<32x16xf32, #tpu.memory_space<vmem>>, vector<1x16xf32>
    %218 = arith.addf %212, %217 : vector<1x16xf32>
    %c2_i32_74 = arith.constant 2 : i32
    %219 = arith.addi %208, %c2_i32_74 : i32
    %220 = arith.index_cast %219 : i32 to index
    %221 = memref.load %arg1[%220] : memref<64xi32, #tpu.memory_space<smem>>
    %222 = arith.index_cast %221 : i32 to index
    %c0_75 = arith.constant 0 : index
    %223 = vector.load %arg2[%222, %c0_75] : memref<32x16xf32, #tpu.memory_space<vmem>>, vector<1x16xf32>
    %224 = arith.addf %218, %223 : vector<1x16xf32>
    %c3_i32_76 = arith.constant 3 : i32
    %225 = arith.addi %208, %c3_i32_76 : i32
    %226 = arith.index_cast %225 : i32 to index
    %227 = memref.load %arg1[%226] : memref<64xi32, #tpu.memory_space<smem>>
    %228 = arith.index_cast %227 : i32 to index
    %c0_77 = arith.constant 0 : index
    %229 = vector.load %arg2[%228, %c0_77] : memref<32x16xf32, #tpu.memory_space<vmem>>, vector<1x16xf32>
    %230 = arith.addf %224, %229 : vector<1x16xf32>
    %c4_i32_78 = arith.constant 4 : i32
    %231 = arith.addi %208, %c4_i32_78 : i32
    %232 = arith.index_cast %231 : i32 to index
    %233 = memref.load %arg1[%232] : memref<64xi32, #tpu.memory_space<smem>>
    %234 = arith.index_cast %233 : i32 to index
    %c0_79 = arith.constant 0 : index
    %235 = vector.load %arg2[%234, %c0_79] : memref<32x16xf32, #tpu.memory_space<vmem>>, vector<1x16xf32>
    %236 = arith.addf %230, %235 : vector<1x16xf32>
    %c5_i32_80 = arith.constant 5 : i32
    %237 = arith.addi %208, %c5_i32_80 : i32
    %238 = arith.index_cast %237 : i32 to index
    %239 = memref.load %arg1[%238] : memref<64xi32, #tpu.memory_space<smem>>
    %240 = arith.index_cast %239 : i32 to index
    %c0_81 = arith.constant 0 : index
    %241 = vector.load %arg2[%240, %c0_81] : memref<32x16xf32, #tpu.memory_space<vmem>>, vector<1x16xf32>
    %242 = arith.addf %236, %241 : vector<1x16xf32>
    %c6_i32_82 = arith.constant 6 : i32
    %243 = arith.addi %208, %c6_i32_82 : i32
    %244 = arith.index_cast %243 : i32 to index
    %245 = memref.load %arg1[%244] : memref<64xi32, #tpu.memory_space<smem>>
    %246 = arith.index_cast %245 : i32 to index
    %c0_83 = arith.constant 0 : index
    %247 = vector.load %arg2[%246, %c0_83] : memref<32x16xf32, #tpu.memory_space<vmem>>, vector<1x16xf32>
    %248 = arith.addf %242, %247 : vector<1x16xf32>
    %c7_i32_84 = arith.constant 7 : i32
    %249 = arith.addi %208, %c7_i32_84 : i32
    %250 = arith.index_cast %249 : i32 to index
    %251 = memref.load %arg1[%250] : memref<64xi32, #tpu.memory_space<smem>>
    %252 = arith.index_cast %251 : i32 to index
    %c0_85 = arith.constant 0 : index
    %253 = vector.load %arg2[%252, %c0_85] : memref<32x16xf32, #tpu.memory_space<vmem>>, vector<1x16xf32>
    %254 = arith.addf %248, %253 : vector<1x16xf32>
    %c8_i32_86 = arith.constant 8 : i32
    %255 = arith.muli %arg0, %c8_i32_86 : i32
    %c8_i32_87 = arith.constant 8 : i32
    %256 = arith.muli %c0_i32, %c8_i32_87 : i32
    %257 = arith.addi %255, %256 : i32
    %c5_i32_88 = arith.constant 5 : i32
    %258 = arith.addi %257, %c5_i32_88 : i32
    %c8_i32_89 = arith.constant 8 : i32
    %259 = arith.muli %258, %c8_i32_89 : i32
    %260 = arith.index_cast %259 : i32 to index
    %261 = memref.load %arg1[%260] : memref<64xi32, #tpu.memory_space<smem>>
    %262 = arith.index_cast %261 : i32 to index
    %c0_90 = arith.constant 0 : index
    %263 = vector.load %arg2[%262, %c0_90] : memref<32x16xf32, #tpu.memory_space<vmem>>, vector<1x16xf32>
    %c1_i32_91 = arith.constant 1 : i32
    %264 = arith.addi %259, %c1_i32_91 : i32
    %265 = arith.index_cast %264 : i32 to index
    %266 = memref.load %arg1[%265] : memref<64xi32, #tpu.memory_space<smem>>
    %267 = arith.index_cast %266 : i32 to index
    %c0_92 = arith.constant 0 : index
    %268 = vector.load %arg2[%267, %c0_92] : memref<32x16xf32, #tpu.memory_space<vmem>>, vector<1x16xf32>
    %269 = arith.addf %263, %268 : vector<1x16xf32>
    %c2_i32_93 = arith.constant 2 : i32
    %270 = arith.addi %259, %c2_i32_93 : i32
    %271 = arith.index_cast %270 : i32 to index
    %272 = memref.load %arg1[%271] : memref<64xi32, #tpu.memory_space<smem>>
    %273 = arith.index_cast %272 : i32 to index
    %c0_94 = arith.constant 0 : index
    %274 = vector.load %arg2[%273, %c0_94] : memref<32x16xf32, #tpu.memory_space<vmem>>, vector<1x16xf32>
    %275 = arith.addf %269, %274 : vector<1x16xf32>
    %c3_i32_95 = arith.constant 3 : i32
    %276 = arith.addi %259, %c3_i32_95 : i32
    %277 = arith.index_cast %276 : i32 to index
    %278 = memref.load %arg1[%277] : memref<64xi32, #tpu.memory_space<smem>>
    %279 = arith.index_cast %278 : i32 to index
    %c0_96 = arith.constant 0 : index
    %280 = vector.load %arg2[%279, %c0_96] : memref<32x16xf32, #tpu.memory_space<vmem>>, vector<1x16xf32>
    %281 = arith.addf %275, %280 : vector<1x16xf32>
    %c4_i32_97 = arith.constant 4 : i32
    %282 = arith.addi %259, %c4_i32_97 : i32
    %283 = arith.index_cast %282 : i32 to index
    %284 = memref.load %arg1[%283] : memref<64xi32, #tpu.memory_space<smem>>
    %285 = arith.index_cast %284 : i32 to index
    %c0_98 = arith.constant 0 : index
    %286 = vector.load %arg2[%285, %c0_98] : memref<32x16xf32, #tpu.memory_space<vmem>>, vector<1x16xf32>
    %287 = arith.addf %281, %286 : vector<1x16xf32>
    %c5_i32_99 = arith.constant 5 : i32
    %288 = arith.addi %259, %c5_i32_99 : i32
    %289 = arith.index_cast %288 : i32 to index
    %290 = memref.load %arg1[%289] : memref<64xi32, #tpu.memory_space<smem>>
    %291 = arith.index_cast %290 : i32 to index
    %c0_100 = arith.constant 0 : index
    %292 = vector.load %arg2[%291, %c0_100] : memref<32x16xf32, #tpu.memory_space<vmem>>, vector<1x16xf32>
    %293 = arith.addf %287, %292 : vector<1x16xf32>
    %c6_i32_101 = arith.constant 6 : i32
    %294 = arith.addi %259, %c6_i32_101 : i32
    %295 = arith.index_cast %294 : i32 to index
    %296 = memref.load %arg1[%295] : memref<64xi32, #tpu.memory_space<smem>>
    %297 = arith.index_cast %296 : i32 to index
    %c0_102 = arith.constant 0 : index
    %298 = vector.load %arg2[%297, %c0_102] : memref<32x16xf32, #tpu.memory_space<vmem>>, vector<1x16xf32>
    %299 = arith.addf %293, %298 : vector<1x16xf32>
    %c7_i32_103 = arith.constant 7 : i32
    %300 = arith.addi %259, %c7_i32_103 : i32
    %301 = arith.index_cast %300 : i32 to index
    %302 = memref.load %arg1[%301] : memref<64xi32, #tpu.memory_space<smem>>
    %303 = arith.index_cast %302 : i32 to index
    %c0_104 = arith.constant 0 : index
    %304 = vector.load %arg2[%303, %c0_104] : memref<32x16xf32, #tpu.memory_space<vmem>>, vector<1x16xf32>
    %305 = arith.addf %299, %304 : vector<1x16xf32>
    %c8_i32_105 = arith.constant 8 : i32
    %306 = arith.muli %arg0, %c8_i32_105 : i32
    %c8_i32_106 = arith.constant 8 : i32
    %307 = arith.muli %c0_i32, %c8_i32_106 : i32
    %308 = arith.addi %306, %307 : i32
    %c6_i32_107 = arith.constant 6 : i32
    %309 = arith.addi %308, %c6_i32_107 : i32
    %c8_i32_108 = arith.constant 8 : i32
    %310 = arith.muli %309, %c8_i32_108 : i32
    %311 = arith.index_cast %310 : i32 to index
    %312 = memref.load %arg1[%311] : memref<64xi32, #tpu.memory_space<smem>>
    %313 = arith.index_cast %312 : i32 to index
    %c0_109 = arith.constant 0 : index
    %314 = vector.load %arg2[%313, %c0_109] : memref<32x16xf32, #tpu.memory_space<vmem>>, vector<1x16xf32>
    %c1_i32_110 = arith.constant 1 : i32
    %315 = arith.addi %310, %c1_i32_110 : i32
    %316 = arith.index_cast %315 : i32 to index
    %317 = memref.load %arg1[%316] : memref<64xi32, #tpu.memory_space<smem>>
    %318 = arith.index_cast %317 : i32 to index
    %c0_111 = arith.constant 0 : index
    %319 = vector.load %arg2[%318, %c0_111] : memref<32x16xf32, #tpu.memory_space<vmem>>, vector<1x16xf32>
    %320 = arith.addf %314, %319 : vector<1x16xf32>
    %c2_i32_112 = arith.constant 2 : i32
    %321 = arith.addi %310, %c2_i32_112 : i32
    %322 = arith.index_cast %321 : i32 to index
    %323 = memref.load %arg1[%322] : memref<64xi32, #tpu.memory_space<smem>>
    %324 = arith.index_cast %323 : i32 to index
    %c0_113 = arith.constant 0 : index
    %325 = vector.load %arg2[%324, %c0_113] : memref<32x16xf32, #tpu.memory_space<vmem>>, vector<1x16xf32>
    %326 = arith.addf %320, %325 : vector<1x16xf32>
    %c3_i32_114 = arith.constant 3 : i32
    %327 = arith.addi %310, %c3_i32_114 : i32
    %328 = arith.index_cast %327 : i32 to index
    %329 = memref.load %arg1[%328] : memref<64xi32, #tpu.memory_space<smem>>
    %330 = arith.index_cast %329 : i32 to index
    %c0_115 = arith.constant 0 : index
    %331 = vector.load %arg2[%330, %c0_115] : memref<32x16xf32, #tpu.memory_space<vmem>>, vector<1x16xf32>
    %332 = arith.addf %326, %331 : vector<1x16xf32>
    %c4_i32_116 = arith.constant 4 : i32
    %333 = arith.addi %310, %c4_i32_116 : i32
    %334 = arith.index_cast %333 : i32 to index
    %335 = memref.load %arg1[%334] : memref<64xi32, #tpu.memory_space<smem>>
    %336 = arith.index_cast %335 : i32 to index
    %c0_117 = arith.constant 0 : index
    %337 = vector.load %arg2[%336, %c0_117] : memref<32x16xf32, #tpu.memory_space<vmem>>, vector<1x16xf32>
    %338 = arith.addf %332, %337 : vector<1x16xf32>
    %c5_i32_118 = arith.constant 5 : i32
    %339 = arith.addi %310, %c5_i32_118 : i32
    %340 = arith.index_cast %339 : i32 to index
    %341 = memref.load %arg1[%340] : memref<64xi32, #tpu.memory_space<smem>>
    %342 = arith.index_cast %341 : i32 to index
    %c0_119 = arith.constant 0 : index
    %343 = vector.load %arg2[%342, %c0_119] : memref<32x16xf32, #tpu.memory_space<vmem>>, vector<1x16xf32>
    %344 = arith.addf %338, %343 : vector<1x16xf32>
    %c6_i32_120 = arith.constant 6 : i32
    %345 = arith.addi %310, %c6_i32_120 : i32
    %346 = arith.index_cast %345 : i32 to index
    %347 = memref.load %arg1[%346] : memref<64xi32, #tpu.memory_space<smem>>
    %348 = arith.index_cast %347 : i32 to index
    %c0_121 = arith.constant 0 : index
    %349 = vector.load %arg2[%348, %c0_121] : memref<32x16xf32, #tpu.memory_space<vmem>>, vector<1x16xf32>
    %350 = arith.addf %344, %349 : vector<1x16xf32>
    %c7_i32_122 = arith.constant 7 : i32
    %351 = arith.addi %310, %c7_i32_122 : i32
    %352 = arith.index_cast %351 : i32 to index
    %353 = memref.load %arg1[%352] : memref<64xi32, #tpu.memory_space<smem>>
    %354 = arith.index_cast %353 : i32 to index
    %c0_123 = arith.constant 0 : index
    %355 = vector.load %arg2[%354, %c0_123] : memref<32x16xf32, #tpu.memory_space<vmem>>, vector<1x16xf32>
    %356 = arith.addf %350, %355 : vector<1x16xf32>
    %c8_i32_124 = arith.constant 8 : i32
    %357 = arith.muli %arg0, %c8_i32_124 : i32
    %c8_i32_125 = arith.constant 8 : i32
    %358 = arith.muli %c0_i32, %c8_i32_125 : i32
    %359 = arith.addi %357, %358 : i32
    %c7_i32_126 = arith.constant 7 : i32
    %360 = arith.addi %359, %c7_i32_126 : i32
    %c8_i32_127 = arith.constant 8 : i32
    %361 = arith.muli %360, %c8_i32_127 : i32
    %362 = arith.index_cast %361 : i32 to index
    %363 = memref.load %arg1[%362] : memref<64xi32, #tpu.memory_space<smem>>
    %364 = arith.index_cast %363 : i32 to index
    %c0_128 = arith.constant 0 : index
    %365 = vector.load %arg2[%364, %c0_128] : memref<32x16xf32, #tpu.memory_space<vmem>>, vector<1x16xf32>
    %c1_i32_129 = arith.constant 1 : i32
    %366 = arith.addi %361, %c1_i32_129 : i32
    %367 = arith.index_cast %366 : i32 to index
    %368 = memref.load %arg1[%367] : memref<64xi32, #tpu.memory_space<smem>>
    %369 = arith.index_cast %368 : i32 to index
    %c0_130 = arith.constant 0 : index
    %370 = vector.load %arg2[%369, %c0_130] : memref<32x16xf32, #tpu.memory_space<vmem>>, vector<1x16xf32>
    %371 = arith.addf %365, %370 : vector<1x16xf32>
    %c2_i32_131 = arith.constant 2 : i32
    %372 = arith.addi %361, %c2_i32_131 : i32
    %373 = arith.index_cast %372 : i32 to index
    %374 = memref.load %arg1[%373] : memref<64xi32, #tpu.memory_space<smem>>
    %375 = arith.index_cast %374 : i32 to index
    %c0_132 = arith.constant 0 : index
    %376 = vector.load %arg2[%375, %c0_132] : memref<32x16xf32, #tpu.memory_space<vmem>>, vector<1x16xf32>
    %377 = arith.addf %371, %376 : vector<1x16xf32>
    %c3_i32_133 = arith.constant 3 : i32
    %378 = arith.addi %361, %c3_i32_133 : i32
    %379 = arith.index_cast %378 : i32 to index
    %380 = memref.load %arg1[%379] : memref<64xi32, #tpu.memory_space<smem>>
    %381 = arith.index_cast %380 : i32 to index
    %c0_134 = arith.constant 0 : index
    %382 = vector.load %arg2[%381, %c0_134] : memref<32x16xf32, #tpu.memory_space<vmem>>, vector<1x16xf32>
    %383 = arith.addf %377, %382 : vector<1x16xf32>
    %c4_i32_135 = arith.constant 4 : i32
    %384 = arith.addi %361, %c4_i32_135 : i32
    %385 = arith.index_cast %384 : i32 to index
    %386 = memref.load %arg1[%385] : memref<64xi32, #tpu.memory_space<smem>>
    %387 = arith.index_cast %386 : i32 to index
    %c0_136 = arith.constant 0 : index
    %388 = vector.load %arg2[%387, %c0_136] : memref<32x16xf32, #tpu.memory_space<vmem>>, vector<1x16xf32>
    %389 = arith.addf %383, %388 : vector<1x16xf32>
    %c5_i32_137 = arith.constant 5 : i32
    %390 = arith.addi %361, %c5_i32_137 : i32
    %391 = arith.index_cast %390 : i32 to index
    %392 = memref.load %arg1[%391] : memref<64xi32, #tpu.memory_space<smem>>
    %393 = arith.index_cast %392 : i32 to index
    %c0_138 = arith.constant 0 : index
    %394 = vector.load %arg2[%393, %c0_138] : memref<32x16xf32, #tpu.memory_space<vmem>>, vector<1x16xf32>
    %395 = arith.addf %389, %394 : vector<1x16xf32>
    %c6_i32_139 = arith.constant 6 : i32
    %396 = arith.addi %361, %c6_i32_139 : i32
    %397 = arith.index_cast %396 : i32 to index
    %398 = memref.load %arg1[%397] : memref<64xi32, #tpu.memory_space<smem>>
    %399 = arith.index_cast %398 : i32 to index
    %c0_140 = arith.constant 0 : index
    %400 = vector.load %arg2[%399, %c0_140] : memref<32x16xf32, #tpu.memory_space<vmem>>, vector<1x16xf32>
    %401 = arith.addf %395, %400 : vector<1x16xf32>
    %c7_i32_141 = arith.constant 7 : i32
    %402 = arith.addi %361, %c7_i32_141 : i32
    %403 = arith.index_cast %402 : i32 to index
    %404 = memref.load %arg1[%403] : memref<64xi32, #tpu.memory_space<smem>>
    %405 = arith.index_cast %404 : i32 to index
    %c0_142 = arith.constant 0 : index
    %406 = vector.load %arg2[%405, %c0_142] : memref<32x16xf32, #tpu.memory_space<vmem>>, vector<1x16xf32>
    %407 = arith.addf %401, %406 : vector<1x16xf32>
    %408 = tpu.concatenate %50, %101, %152, %203, %254, %305, %356, %407 in 0 : vector<1x16xf32>, vector<1x16xf32>, vector<1x16xf32>, vector<1x16xf32>, vector<1x16xf32>, vector<1x16xf32>, vector<1x16xf32>, vector<1x16xf32> -> vector<8x16xf32>
    %cst = arith.constant 0.000000e+00 : f32
    %409 = vector.broadcast %cst : f32 to vector<8x16xf32>
    %410 = arith.maximumf %408, %409 : vector<8x16xf32>
    %c0_143 = arith.constant 0 : index
    %c0_144 = arith.constant 0 : index
    %411 = vector.load %arg3[%c0_143, %c0_144] : memref<16x128xf32, #tpu.memory_space<vmem>>, vector<16x128xf32>
    %cst_145 = arith.constant dense<0.000000e+00> : vector<8x128xf32>
    %412 = tpu.matmul %410, %411, %cst_145 {dimension_numbers = #tpu.dot_dimension_numbers<[1], [0], [0], [1], [0, 0, 1, 1], [], []>} : vector<8x16xf32>, vector<16x128xf32>, vector<8x128xf32> -> vector<8x128xf32>
    %c0_146 = arith.constant 0 : index
    %c0_147 = arith.constant 0 : index
    %413 = vector.load %arg4[%c0_146, %c0_147] : memref<1x128xf32, #tpu.memory_space<vmem>>, vector<1x128xf32>
    %414 = vector.broadcast %413 : vector<1x128xf32> to vector<8x128xf32>
    %415 = arith.addf %412, %414 : vector<8x128xf32>
    %c8_i32_148 = arith.constant 8 : i32
    %416 = arith.muli %c0_i32, %c8_i32_148 : i32
    %417 = tpu.assume_multiple %416, 8 : i32
    %418 = arith.index_cast %417 : i32 to index
    %c0_149 = arith.constant 0 : index
    %419 = vector.load %arg5[%418, %c0_149] : memref<8x128xf32, #tpu.memory_space<vmem>>, vector<8x128xf32>
    tpu.vector_store %arg5[%418, %c0_149], %415 {strides = array<i32>} : memref<8x128xf32, #tpu.memory_space<vmem>>, vector<8x128xf32>,
    %c1_i32_150 = arith.constant 1 : i32
    return
  }
  func.func @transform_0(%arg0: i32, %arg1: memref<64xi32, #tpu.memory_space<smem>>) -> (i32, i32) {
    %c0_i32 = arith.constant 0 : i32
    %c0_i32_0 = arith.constant 0 : i32
    %c0_i32_1 = arith.constant 0 : i32
    return %c0_i32, %c0_i32_0 : i32, i32
  }
  func.func @transform_1(%arg0: i32, %arg1: memref<64xi32, #tpu.memory_space<smem>>) -> (i32, i32) {
    %c0_i32 = arith.constant 0 : i32
    %c0_i32_0 = arith.constant 0 : i32
    %c0_i32_1 = arith.constant 0 : i32
    return %c0_i32, %c0_i32_0 : i32, i32
  }
  func.func @transform_2(%arg0: i32, %arg1: memref<64xi32, #tpu.memory_space<smem>>) -> (i32, i32) {
    %c0_i32 = arith.constant 0 : i32
    %c0_i32_0 = arith.constant 0 : i32
    %c0_i32_1 = arith.constant 0 : i32
    return %c0_i32, %c0_i32_0 : i32, i32
  }
  func.func @transform_3(%arg0: i32, %arg1: memref<64xi32, #tpu.memory_space<smem>>) -> (i32, i32) {
    %c0_i32 = arith.constant 0 : i32
    %c0_i32_0 = arith.constant 0 : i32
    return %arg0, %c0_i32 : i32, i32
  }
}

</mosaic_0001>

<llo_original>
// kernel: tpu_custom_call.1
$region0: #{tpu_custom_call.1}
  #allocation0 [shape = 'u32[]', space=smem, size = 0x4, offset = 0x4, fixed_abs, tag = 'smem constant byte address 0x4 - core index']
  #allocation1 [shape = 'u32[144,128]{1,0:T(1,128)}', space=vmem, size = 0x12000, scoped, tag = 'internal scratch']
  #allocation2 [shape = 's32[1]{0}', space=sflag, size = 0x4, scoped, tag = 'scoped memory for tpu_custom_call.1']
  #allocation3 [shape = 'u8[512]{0}', space=smem, size = 0x200, scoped, tag = 'prefetched SMEM operand 0']
  %s0 = inlined_call_operand.vmem [shape: s32[64], index: 0, kind: input, shape index: {}]
  %s1 = inlined_call_operand.vmem [shape: f32[32,16], index: 1, kind: input, shape index: {}]
  %s2 = inlined_call_operand.vmem [shape: f32[16,128], index: 2, kind: input, shape index: {}]
  %s3 = inlined_call_operand.vmem [shape: f32[1,128], index: 3, kind: input, shape index: {}]
  %s4 = inlined_call_operand.hbm [shape: f32[8,128], index: 4, kind: output, shape index: {}]
  %s5 = sld [smem:[#allocation0]]
  $region22: #{tpu_custom_call.1} parent=0
    _
  %s7 = ssub.s32 1, %s5
  %s8 = scalar_select 0, %s7, %s5
  %s9 = sshll.u32 %s0, 4
  %s10 = int_to_ptr.vmem [resolvable:$true] %s9
  %12 = dma.vmem_to_smem %s10, 16, [#allocation3], [#allocation2]
  %13 = dma.done [#allocation2], 16
  %14 = sfence
  $region1: #{tpu_custom_call.1} parent=0
    #allocation4 [shape = 'u8[4096]{0}', space=vmem, size = 0x1000, scoped, tag = 'output window, operand 0, single buffered']
    #allocation5 [shape = 's32[1]{0}', space=sflag, size = 0x4, scoped, tag = 'scoped memory for tpu_custom_call.1']
    %15 = vsyncpa [#allocation5], 0
    // Predicated region
    $region2: #{tpu_custom_call.1} parent=1 // pred_check
      _
    $region3: #{tpu_custom_call.1} parent=1 // pred_check_branch
      %17 = sbr.rel (0) target = $region5
    $region4: #{tpu_custom_call.1} parent=1 // pred_region
      _
    $region5: #{tpu_custom_call.1} parent=1 // pred_fallthru
      _
    // Predicated region
    $region6: #{tpu_custom_call.1} parent=1 // pred_check
      _
    $region7: #{tpu_custom_call.1} parent=1 // pred_check_branch
      %19 = sbr.rel (0) target = $region9
    $region8: #{tpu_custom_call.1} parent=1 // pred_region
      _
    $region9: #{tpu_custom_call.1} parent=1 // pred_fallthru
      _
    // Predicated region
    $region10: #{tpu_custom_call.1} parent=1 // pred_check
      _
    $region11: #{tpu_custom_call.1} parent=1 // pred_check_branch
      %21 = sbr.rel (0) target = $region13
    $region12: #{tpu_custom_call.1} parent=1 // pred_region
      _
    $region13: #{tpu_custom_call.1} parent=1 // pred_fallthru
      _
    %s22 = smul.u32 0, 64
    %s23 = sld [smem:[#allocation3 + %s22]]
    %s24 = scalar_lea.vmem %s1, %s23
    %v25 = vld [vmem:[%s24] sm:$0x1]
    %s26 = sadd.s32 %s22, 1
    %s27 = sld [smem:[#allocation3 + %s26]]
    %s28 = scalar_lea.vmem %s1, %s27
    %v29 = vld [vmem:[%s28] sm:$0x1]
    %v30 = vadd.f32 %v25, %v29
    %s31 = sadd.s32 %s22, 2
    %s32 = sld [smem:[#allocation3 + %s31]]
    %s33 = scalar_lea.vmem %s1, %s32
    %v34 = vld [vmem:[%s33] sm:$0x1]
    %v35 = vadd.f32 %v30, %v34
    %s36 = sadd.s32 %s22, 3
    %s37 = sld [smem:[#allocation3 + %s36]]
    %s38 = scalar_lea.vmem %s1, %s37
    %v39 = vld [vmem:[%s38] sm:$0x1]
    %v40 = vadd.f32 %v35, %v39
    %s41 = sadd.s32 %s22, 4
    %s42 = sld [smem:[#allocation3 + %s41]]
    %s43 = scalar_lea.vmem %s1, %s42
    %v44 = vld [vmem:[%s43] sm:$0x1]
    %v45 = vadd.f32 %v40, %v44
    %s46 = sadd.s32 %s22, 5
    %s47 = sld [smem:[#allocation3 + %s46]]
    %s48 = scalar_lea.vmem %s1, %s47
    %v49 = vld [vmem:[%s48] sm:$0x1]
    %v50 = vadd.f32 %v45, %v49
    %s51 = sadd.s32 %s22, 6
    %s52 = sld [smem:[#allocation3 + %s51]]
    %s53 = scalar_lea.vmem %s1, %s52
    %v54 = vld [vmem:[%s53] sm:$0x1]
    %v55 = vadd.f32 %v50, %v54
    %s56 = sadd.s32 %s22, 7
    %s57 = sld [smem:[#allocation3 + %s56]]
    %s58 = scalar_lea.vmem %s1, %s57
    %v59 = vld [vmem:[%s58] sm:$0x1]
    %v60 = vadd.f32 %v55, %v59
    %s61 = smul.u32 0, 8
    %s62 = sadd.s32 %s61, 1
    %s63 = smul.u32 %s62, 8
    %s64 = sld [smem:[#allocation3 + %s63]]
    %s65 = scalar_lea.vmem %s1, %s64
    %v66 = vld [vmem:[%s65] sm:$0x1]
    %s67 = sadd.s32 %s63, 1
    %s68 = sld [smem:[#allocation3 + %s67]]
    %s69 = scalar_lea.vmem %s1, %s68
    %v70 = vld [vmem:[%s69] sm:$0x1]
    %v71 = vadd.f32 %v66, %v70
    %s72 = sadd.s32 %s63, 2
    %s73 = sld [smem:[#allocation3 + %s72]]
    %s74 = scalar_lea.vmem %s1, %s73
    %v75 = vld [vmem:[%s74] sm:$0x1]
    %v76 = vadd.f32 %v71, %v75
    %s77 = sadd.s32 %s63, 3
    %s78 = sld [smem:[#allocation3 + %s77]]
    %s79 = scalar_lea.vmem %s1, %s78
    %v80 = vld [vmem:[%s79] sm:$0x1]
    %v81 = vadd.f32 %v76, %v80
    %s82 = sadd.s32 %s63, 4
    %s83 = sld [smem:[#allocation3 + %s82]]
    %s84 = scalar_lea.vmem %s1, %s83
    %v85 = vld [vmem:[%s84] sm:$0x1]
    %v86 = vadd.f32 %v81, %v85
    %s87 = sadd.s32 %s63, 5
    %s88 = sld [smem:[#allocation3 + %s87]]
    %s89 = scalar_lea.vmem %s1, %s88
    %v90 = vld [vmem:[%s89] sm:$0x1]
    %v91 = vadd.f32 %v86, %v90
    %s92 = sadd.s32 %s63, 6
    %s93 = sld [smem:[#allocation3 + %s92]]
    %s94 = scalar_lea.vmem %s1, %s93
    %v95 = vld [vmem:[%s94] sm:$0x1]
    %v96 = vadd.f32 %v91, %v95
    %s97 = sadd.s32 %s63, 7
    %s98 = sld [smem:[#allocation3 + %s97]]
    %s99 = scalar_lea.vmem %s1, %s98
    %v100 = vld [vmem:[%s99] sm:$0x1]
    %v101 = vadd.f32 %v96, %v100
    %s102 = sadd.s32 %s61, 2
    %s103 = smul.u32 %s102, 8
    %s104 = sld [smem:[#allocation3 + %s103]]
    %s105 = scalar_lea.vmem %s1, %s104
    %v106 = vld [vmem:[%s105] sm:$0x1]
    %s107 = sadd.s32 %s103, 1
    %s108 = sld [smem:[#allocation3 + %s107]]
    %s109 = scalar_lea.vmem %s1, %s108
    %v110 = vld [vmem:[%s109] sm:$0x1]
    %v111 = vadd.f32 %v106, %v110
    %s112 = sadd.s32 %s103, 2
    %s113 = sld [smem:[#allocation3 + %s112]]
    %s114 = scalar_lea.vmem %s1, %s113
    %v115 = vld [vmem:[%s114] sm:$0x1]
    %v116 = vadd.f32 %v111, %v115
    %s117 = sadd.s32 %s103, 3
    %s118 = sld [smem:[#allocation3 + %s117]]
    %s119 = scalar_lea.vmem %s1, %s118
    %v120 = vld [vmem:[%s119] sm:$0x1]
    %v121 = vadd.f32 %v116, %v120
    %s122 = sadd.s32 %s103, 4
    %s123 = sld [smem:[#allocation3 + %s122]]
    %s124 = scalar_lea.vmem %s1, %s123
    %v125 = vld [vmem:[%s124] sm:$0x1]
    %v126 = vadd.f32 %v121, %v125
    %s127 = sadd.s32 %s103, 5
    %s128 = sld [smem:[#allocation3 + %s127]]
    %s129 = scalar_lea.vmem %s1, %s128
    %v130 = vld [vmem:[%s129] sm:$0x1]
    %v131 = vadd.f32 %v126, %v130
    %s132 = sadd.s32 %s103, 6
    %s133 = sld [smem:[#allocation3 + %s132]]
    %s134 = scalar_lea.vmem %s1, %s133
    %v135 = vld [vmem:[%s134] sm:$0x1]
    %v136 = vadd.f32 %v131, %v135
    %s137 = sadd.s32 %s103, 7
    %s138 = sld [smem:[#allocation3 + %s137]]
    %s139 = scalar_lea.vmem %s1, %s138
    %v140 = vld [vmem:[%s139] sm:$0x1]
    %v141 = vadd.f32 %v136, %v140
    %s142 = sadd.s32 %s61, 3
    %s143 = smul.u32 %s142, 8
    %s144 = sld [smem:[#allocation3 + %s143]]
    %s145 = scalar_lea.vmem %s1, %s144
    %v146 = vld [vmem:[%s145] sm:$0x1]
    %s147 = sadd.s32 %s143, 1
    %s148 = sld [smem:[#allocation3 + %s147]]
    %s149 = scalar_lea.vmem %s1, %s148
    %v150 = vld [vmem:[%s149] sm:$0x1]
    %v151 = vadd.f32 %v146, %v150
    %s152 = sadd.s32 %s143, 2
    %s153 = sld [smem:[#allocation3 + %s152]]
    %s154 = scalar_lea.vmem %s1, %s153
    %v155 = vld [vmem:[%s154] sm:$0x1]
    %v156 = vadd.f32 %v151, %v155
    %s157 = sadd.s32 %s143, 3
    %s158 = sld [smem:[#allocation3 + %s157]]
    %s159 = scalar_lea.vmem %s1, %s158
    %v160 = vld [vmem:[%s159] sm:$0x1]
    %v161 = vadd.f32 %v156, %v160
    %s162 = sadd.s32 %s143, 4
    %s163 = sld [smem:[#allocation3 + %s162]]
    %s164 = scalar_lea.vmem %s1, %s163
    %v165 = vld [vmem:[%s164] sm:$0x1]
    %v166 = vadd.f32 %v161, %v165
    %s167 = sadd.s32 %s143, 5
    %s168 = sld [smem:[#allocation3 + %s167]]
    %s169 = scalar_lea.vmem %s1, %s168
    %v170 = vld [vmem:[%s169] sm:$0x1]
    %v171 = vadd.f32 %v166, %v170
    %s172 = sadd.s32 %s143, 6
    %s173 = sld [smem:[#allocation3 + %s172]]
    %s174 = scalar_lea.vmem %s1, %s173
    %v175 = vld [vmem:[%s174] sm:$0x1]
    %v176 = vadd.f32 %v171, %v175
    %s177 = sadd.s32 %s143, 7
    %s178 = sld [smem:[#allocation3 + %s177]]
    %s179 = scalar_lea.vmem %s1, %s178
    %v180 = vld [vmem:[%s179] sm:$0x1]
    %v181 = vadd.f32 %v176, %v180
    %s182 = sadd.s32 %s61, 4
    %s183 = smul.u32 %s182, 8
    %s184 = sld [smem:[#allocation3 + %s183]]
    %s185 = scalar_lea.vmem %s1, %s184
    %v186 = vld [vmem:[%s185] sm:$0x1]
    %s187 = sadd.s32 %s183, 1
    %s188 = sld [smem:[#allocation3 + %s187]]
    %s189 = scalar_lea.vmem %s1, %s188
    %v190 = vld [vmem:[%s189] sm:$0x1]
    %v191 = vadd.f32 %v186, %v190
    %s192 = sadd.s32 %s183, 2
    %s193 = sld [smem:[#allocation3 + %s192]]
    %s194 = scalar_lea.vmem %s1, %s193
    %v195 = vld [vmem:[%s194] sm:$0x1]
    %v196 = vadd.f32 %v191, %v195
    %s197 = sadd.s32 %s183, 3
    %s198 = sld [smem:[#allocation3 + %s197]]
    %s199 = scalar_lea.vmem %s1, %s198
    %v200 = vld [vmem:[%s199] sm:$0x1]
    %v201 = vadd.f32 %v196, %v200
    %s202 = sadd.s32 %s183, 4
    %s203 = sld [smem:[#allocation3 + %s202]]
    %s204 = scalar_lea.vmem %s1, %s203
    %v205 = vld [vmem:[%s204] sm:$0x1]
    %v206 = vadd.f32 %v201, %v205
    %s207 = sadd.s32 %s183, 5
    %s208 = sld [smem:[#allocation3 + %s207]]
    %s209 = scalar_lea.vmem %s1, %s208
    %v210 = vld [vmem:[%s209] sm:$0x1]
    %v211 = vadd.f32 %v206, %v210
    %s212 = sadd.s32 %s183, 6
    %s213 = sld [smem:[#allocation3 + %s212]]
    %s214 = scalar_lea.vmem %s1, %s213
    %v215 = vld [vmem:[%s214] sm:$0x1]
    %v216 = vadd.f32 %v211, %v215
    %s217 = sadd.s32 %s183, 7
    %s218 = sld [smem:[#allocation3 + %s217]]
    %s219 = scalar_lea.vmem %s1, %s218
    %v220 = vld [vmem:[%s219] sm:$0x1]
    %v221 = vadd.f32 %v216, %v220
    %s222 = sadd.s32 %s61, 5
    %s223 = smul.u32 %s222, 8
    %s224 = sld [smem:[#allocation3 + %s223]]
    %s225 = scalar_lea.vmem %s1, %s224
    %v226 = vld [vmem:[%s225] sm:$0x1]
    %s227 = sadd.s32 %s223, 1
    %s228 = sld [smem:[#allocation3 + %s227]]
    %s229 = scalar_lea.vmem %s1, %s228
    %v230 = vld [vmem:[%s229] sm:$0x1]
    %v231 = vadd.f32 %v226, %v230
    %s232 = sadd.s32 %s223, 2
    %s233 = sld [smem:[#allocation3 + %s232]]
    %s234 = scalar_lea.vmem %s1, %s233
    %v235 = vld [vmem:[%s234] sm:$0x1]
    %v236 = vadd.f32 %v231, %v235
    %s237 = sadd.s32 %s223, 3
    %s238 = sld [smem:[#allocation3 + %s237]]
    %s239 = scalar_lea.vmem %s1, %s238
    %v240 = vld [vmem:[%s239] sm:$0x1]
    %v241 = vadd.f32 %v236, %v240
    %s242 = sadd.s32 %s223, 4
    %s243 = sld [smem:[#allocation3 + %s242]]
    %s244 = scalar_lea.vmem %s1, %s243
    %v245 = vld [vmem:[%s244] sm:$0x1]
    %v246 = vadd.f32 %v241, %v245
    %s247 = sadd.s32 %s223, 5
    %s248 = sld [smem:[#allocation3 + %s247]]
    %s249 = scalar_lea.vmem %s1, %s248
    %v250 = vld [vmem:[%s249] sm:$0x1]
    %v251 = vadd.f32 %v246, %v250
    %s252 = sadd.s32 %s223, 6
    %s253 = sld [smem:[#allocation3 + %s252]]
    %s254 = scalar_lea.vmem %s1, %s253
    %v255 = vld [vmem:[%s254] sm:$0x1]
    %v256 = vadd.f32 %v251, %v255
    %s257 = sadd.s32 %s223, 7
    %s258 = sld [smem:[#allocation3 + %s257]]
    %s259 = scalar_lea.vmem %s1, %s258
    %v260 = vld [vmem:[%s259] sm:$0x1]
    %v261 = vadd.f32 %v256, %v260
    %s262 = sadd.s32 %s61, 6
    %s263 = smul.u32 %s262, 8
    %s264 = sld [smem:[#allocation3 + %s263]]
    %s265 = scalar_lea.vmem %s1, %s264
    %v266 = vld [vmem:[%s265] sm:$0x1]
    %s267 = sadd.s32 %s263, 1
    %s268 = sld [smem:[#allocation3 + %s267]]
    %s269 = scalar_lea.vmem %s1, %s268
    %v270 = vld [vmem:[%s269] sm:$0x1]
    %v271 = vadd.f32 %v266, %v270
    %s272 = sadd.s32 %s263, 2
    %s273 = sld [smem:[#allocation3 + %s272]]
    %s274 = scalar_lea.vmem %s1, %s273
    %v275 = vld [vmem:[%s274] sm:$0x1]
    %v276 = vadd.f32 %v271, %v275
    %s277 = sadd.s32 %s263, 3
    %s278 = sld [smem:[#allocation3 + %s277]]
    %s279 = scalar_lea.vmem %s1, %s278
    %v280 = vld [vmem:[%s279] sm:$0x1]
    %v281 = vadd.f32 %v276, %v280
    %s282 = sadd.s32 %s263, 4
    %s283 = sld [smem:[#allocation3 + %s282]]
    %s284 = scalar_lea.vmem %s1, %s283
    %v285 = vld [vmem:[%s284] sm:$0x1]
    %v286 = vadd.f32 %v281, %v285
    %s287 = sadd.s32 %s263, 5
    %s288 = sld [smem:[#allocation3 + %s287]]
    %s289 = scalar_lea.vmem %s1, %s288
    %v290 = vld [vmem:[%s289] sm:$0x1]
    %v291 = vadd.f32 %v286, %v290
    %s292 = sadd.s32 %s263, 6
    %s293 = sld [smem:[#allocation3 + %s292]]
    %s294 = scalar_lea.vmem %s1, %s293
    %v295 = vld [vmem:[%s294] sm:$0x1]
    %v296 = vadd.f32 %v291, %v295
    %s297 = sadd.s32 %s263, 7
    %s298 = sld [smem:[#allocation3 + %s297]]
    %s299 = scalar_lea.vmem %s1, %s298
    %v300 = vld [vmem:[%s299] sm:$0x1]
    %v301 = vadd.f32 %v296, %v300
    %s302 = sadd.s32 %s61, 7
    %s303 = smul.u32 %s302, 8
    %s304 = sld [smem:[#allocation3 + %s303]]
    %s305 = scalar_lea.vmem %s1, %s304
    %v306 = vld [vmem:[%s305] sm:$0x1]
    %s307 = sadd.s32 %s303, 1
    %s308 = sld [smem:[#allocation3 + %s307]]
    %s309 = scalar_lea.vmem %s1, %s308
    %v310 = vld [vmem:[%s309] sm:$0x1]
    %v311 = vadd.f32 %v306, %v310
    %s312 = sadd.s32 %s303, 2
    %s313 = sld [smem:[#allocation3 + %s312]]
    %s314 = scalar_lea.vmem %s1, %s313
    %v315 = vld [vmem:[%s314] sm:$0x1]
    %v316 = vadd.f32 %v311, %v315
    %s317 = sadd.s32 %s303, 3
    %s318 = sld [smem:[#allocation3 + %s317]]
    %s319 = scalar_lea.vmem %s1, %s318
    %v320 = vld [vmem:[%s319] sm:$0x1]
    %v321 = vadd.f32 %v316, %v320
    %s322 = sadd.s32 %s303, 4
    %s323 = sld [smem:[#allocation3 + %s322]]
    %s324 = scalar_lea.vmem %s1, %s323
    %v325 = vld [vmem:[%s324] sm:$0x1]
    %v326 = vadd.f32 %v321, %v325
    %s327 = sadd.s32 %s303, 5
    %s328 = sld [smem:[#allocation3 + %s327]]
    %s329 = scalar_lea.vmem %s1, %s328
    %v330 = vld [vmem:[%s329] sm:$0x1]
    %v331 = vadd.f32 %v326, %v330
    %s332 = sadd.s32 %s303, 6
    %s333 = sld [smem:[#allocation3 + %s332]]
    %s334 = scalar_lea.vmem %s1, %s333
    %v335 = vld [vmem:[%s334] sm:$0x1]
    %v336 = vadd.f32 %v331, %v335
    %s337 = sadd.s32 %s303, 7
    %s338 = sld [smem:[#allocation3 + %s337]]
    %s339 = scalar_lea.vmem %s1, %s338
    %v340 = vld [vmem:[%s339] sm:$0x1]
    %v341 = vadd.f32 %v336, %v340
    %v343 = vrot.slane %v101, 7
    %v346 = vrot.slane %v141, 6
    %v349 = vrot.slane %v181, 5
    %v352 = vrot.slane %v221, 4
    %v355 = vrot.slane %v261, 3
    %v358 = vrot.slane %v301, 2
    %v361 = vrot.slane %v341, 1
    %vm363 = vcmask 1040384
    %v364 = vsel %vm363, %v60, %v343
    %vm365 = vcmask 1041408
    %v366 = vsel %vm365, %v364, %v346
    %vm367 = vcmask 1042432
    %v368 = vsel %vm367, %v366, %v349
    %vm369 = vcmask 1043456
    %v370 = vsel %vm369, %v368, %v352
    %vm371 = vcmask 1044480
    %v372 = vsel %vm371, %v370, %v355
    %vm373 = vcmask 1045504
    %v374 = vsel %vm373, %v372, %v358
    %vm375 = vcmask 1046528
    %v376 = vsel %vm375, %v374, %v361
    %v377 = vmax.f32 %v376, 0.0
    %v378 = vld [vmem:[%s2] sm:$0xff]
    %v379 = vld [vmem:[%s2 + $0x8] sm:$0xff]
    %v380 = vld [vmem:[%s3] sm:$0x1]
    %v382 = vlaneseq
    %v383 = vshrl.u32 %v382, 7
    %v384 = vsub.s32 0, %v383
    %v385 = vrot.slane %v380, %v384
    %vm387 = vcmask 130048
    %v389 = vsel %vm387, %v377, 0
    %391 = vmatprep.subr.mxu0 0.0
    %392 = vmatpush1.msra.mxu0 0.0
    %393 = vmatprep.subr.mxu0 0.0
    %394 = vmatpush1.msra.mxu0 0.0
    %395 = vmatprep.subr.mxu0 0.0
    %396 = vmatpush1.msra.mxu0 0.0
    %397 = vmatprep.subr.mxu0 0.0
    %398 = vmatpush1.msra.mxu0 0.0
    %399 = vmatprep.subr.mxu0 0.0
    %400 = vmatpush1.msra.mxu0 0.0
    %401 = vmatprep.subr.mxu0 0.0
    %402 = vmatpush1.msra.mxu0 0.0
    %403 = vmatprep.subr.mxu0 0.0
    %404 = vmatpush1.msra.mxu0 0.0
    %405 = vmatprep.subr.mxu0 0.0
    %406 = vmatpush1.msra.mxu0 0.0
    %407 = vmatprep.subr.mxu0 0.0
    %408 = vmatpush1.msra.mxu0 0.0
    %409 = vmatprep.subr.mxu0 0.0
    %410 = vmatpush1.msra.mxu0 0.0
    %411 = vmatprep.subr.mxu0 0.0
    %412 = vmatpush1.msra.mxu0 0.0
    %413 = vmatprep.subr.mxu0 0.0
    %414 = vmatpush1.msra.mxu0 0.0
    %415 = vmatprep.subr.mxu0 0.0
    %416 = vmatpush1.msra.mxu0 0.0
    %417 = vmatprep.subr.mxu0 0.0
    %418 = vmatpush1.msra.mxu0 0.0
    %419 = vmatprep.subr.mxu0 0.0
    %420 = vmatpush1.msra.mxu0 %v379
    %421 = vmatprep.subr.mxu0 0.0
    %422 = vmatpush1.msra.mxu0 %v378
    %423 = vmatprep.subr.mxu0 0.0
    %424 = vmatpush2.msra.mxu0 0.0
    %425 = vmatprep.subr.mxu0 0.0
    %426 = vmatpush2.msra.mxu0 0.0
    %427 = vmatprep.subr.mxu0 0.0
    %428 = vmatpush2.msra.mxu0 0.0
    %429 = vmatprep.subr.mxu0 0.0
    %430 = vmatpush2.msra.mxu0 0.0
    %431 = vmatprep.subr.mxu0 0.0
    %432 = vmatpush2.msra.mxu0 0.0
    %433 = vmatprep.subr.mxu0 0.0
    %434 = vmatpush2.msra.mxu0 0.0
    %435 = vmatprep.subr.mxu0 0.0
    %436 = vmatpush2.msra.mxu0 0.0
    %437 = vmatprep.subr.mxu0 0.0
    %438 = vmatpush2.msra.mxu0 0.0
    %439 = vmatprep.subr.mxu0 0.0
    %440 = vmatpush2.msra.mxu0 0.0
    %441 = vmatprep.subr.mxu0 0.0
    %442 = vmatpush2.msra.mxu0 0.0
    %443 = vmatprep.subr.mxu0 0.0
    %444 = vmatpush2.msra.mxu0 0.0
    %445 = vmatprep.subr.mxu0 0.0
    %446 = vmatpush2.msra.mxu0 0.0
    %447 = vmatprep.subr.mxu0 0.0
    %448 = vmatpush2.msra.mxu0 0.0
    %449 = vmatprep.subr.mxu0 0.0
    %450 = vmatpush2.msra.mxu0 0.0
    %451 = vmatprep.subr.mxu0 0.0
    %452 = vmatpush2.msra.mxu0 0.0
    %453 = vmatprep.subr.mxu0 0.0
    %454 = vmatpush2.msra.mxu0 0.0
    %455 = vmatprep.mubr.f32.mxu0 0.0
    %456 = vmatmul.mubr.f32.gmra.mxu0 %v389
    %v457 = vpop.f32.mrf.mxu0
    %v458 = vadd.f32 %v385, %v457
    %v459 = vpop.f32.mrf.mxu0
    %460 = vdwg.mxu0
    %461 = vst [vmem:[#allocation4] sm:$0xff] %v458
    // Predicated region
    $region14: #{tpu_custom_call.1} parent=1 // pred_check
      _
    $region15: #{tpu_custom_call.1} parent=1 // pred_check_branch
      %463 = sbr.rel (0) target = $region17
    $region16: #{tpu_custom_call.1} parent=1 // pred_region
      %s465 = ssub.s32 128, 128
      %466 = vsyncadd [#allocation5], %s465
      %s468 = sshll.u32 [#allocation4], 4
      %s469 = int_to_ptr.vmem [resolvable:$true] %s468
      %471 = dma.vmem_to_hbm [thread:$0]  %s469, 128, %s4, [#allocation5]
    $region17: #{tpu_custom_call.1} parent=1 // pred_fallthru
      _
    // Predicated region
    $region18: #{tpu_custom_call.1} parent=1 // pred_check
      _
    $region19: #{tpu_custom_call.1} parent=1 // pred_check_branch
      %473 = sbr.rel (0) target = $region21
    $region20: #{tpu_custom_call.1} parent=1 // pred_region
      %474 = dma.done [#allocation5], 128
    $region21: #{tpu_custom_call.1} parent=1 // pred_fallthru
      _
    %475 = vsyncpa [#allocation5], 1

</llo_original>
